<compile_context>
chip_gen: v6e
topology: v6e:2x2x1
jax: 0.10.0
libtpu: 0.0.40
codegen_flags: <defaults>
</compile_context>

<pallas_src>
import functools

import numpy as np

import jax
import jax.numpy as jnp
from jax import lax
from jax.experimental import pallas as pl
from jax.experimental.pallas import tpu as pltpu


# ----------------------------------------------------------------------------
# Kernel: one row-tile of the fused multi-level head.
# ----------------------------------------------------------------------------
def _idetect_kernel(tile_rows,
                    lvl_ref, rb_ref, geom_ref,       # scalar prefetch (SMEM)
                    x_ref, w_ref, cst_ref,           # VMEM inputs
                    raw_ref, dec_ref):               # VMEM outputs
    i = pl.program_id(0)

    # Per-level scalars from SMEM (geom is level-major, 8 floats per level).
    lvl = lvl_ref[i]
    g0 = lvl * 8
    inv_w = geom_ref[g0 + 0]            # 1 / W
    w_f = geom_ref[g0 + 1]              # W
    inv_h = geom_ref[g0 + 2]            # 1 / H
    h_f = geom_ref[g0 + 3]              # H
    stride = geom_ref[g0 + 4]           # stride
    stride2 = geom_ref[g0 + 5]          # 2 * stride
    neg_hstride = geom_ref[g0 + 6]      # -0.5 * stride
    row_base = rb_ref[i].astype(jnp.float32)

    # Per-level lane constants (VMEM rows): b_eff / 4*anchor / channel role.
    b_eff = cst_ref[0:1, :]             # (1, noc_p)
    anch4 = cst_ref[1:2, :]
    role = cst_ref[2:3, :]              # 0:x  1:y  2:wh  3:other/pad
    is_x = role == 0.0
    is_y = role == 1.0
    is_xy = role < 2.0
    is_wh = role == 2.0

    # Fused ImplicitA -> conv -> ImplicitM -> conv: one bf16 matmul, f32 acc.
    t = jnp.dot(x_ref[...], w_ref[...], preferred_element_type=jnp.float32) + b_eff
    raw_ref[...] = t.astype(raw_ref.dtype)          # "training-layout" output

    s = jax.nn.sigmoid(t)

    # Detection-grid offsets at (tile_rows, 1); rows within a level are ordered
    # (batch, y, x).  Multiplies by host-precomputed 1/W, 1/H; the +0.5 guards
    # floor against f32 rounding at exact multiples (row indices < 2^22).
    row = row_base + lax.broadcasted_iota(
        jnp.int32, (tile_rows, 1), 0).astype(jnp.float32)
    q = jnp.floor((row + 0.5) * inv_w)              # row // W
    gx = row - q * w_f                              # row %  W
    gy = q - jnp.floor((q + 0.5) * inv_h) * h_f     # (row // W) % H
    gx_s = gx * stride + neg_hstride                # (gx - 0.5) * stride
    gy_s = gy * stride + neg_hstride

    grid_term = jnp.where(is_x, gx_s, jnp.where(is_y, gy_s, 0.0))
    dec_ref[...] = jnp.where(is_xy, s * stride2 + grid_term,
                             jnp.where(is_wh, (s * s) * anch4, s))


# ----------------------------------------------------------------------------
# Wrapper: fold parameters, fuse levels, launch one pipelined pallas_call.
# ----------------------------------------------------------------------------
def idetect_forward(xs, params, anchors, strides, na, no, tile_rows=1024):
    """Eval-mode IDetect forward. Returns (z_cat, x_list) like the PyTorch module."""
    assert tile_rows % 8 == 0, "tile_rows must be a multiple of 8 (sublane tiling)"
    nl = len(xs)
    noc = na * no
    noc_p = ((noc + 127) // 128) * 128      # lane-dense stores + whole MXU tiles

    # Per-lane role codes (compile-time per-level constants, padded lanes -> 3).
    o_idx = np.tile(np.arange(no), na)
    role_np = np.full((noc_p,), 3.0, np.float32)
    role_np[:noc] = np.where(o_idx == 0, 0.0,
                             np.where(o_idx == 1, 1.0,
                                      np.where(o_idx < 4, 2.0, 3.0)))
    role = jnp.asarray(role_np)

    x_slabs, level_meta = [], []
    lvl_l, rb_l = [], []
    w_eff_l, cst_l, geom_l = [], [], []
    off = 0
    for i in range(nl):
        B, C, H, W = xs[i].shape
        # forward applies self.m[i] twice -> only shape-consistent if C == na*no
        assert C == noc, "IDetect forward (double 1x1 conv) requires ch[i] == na*no"
        N = B * H * W
        assert N < (1 << 22), "row index must stay well below 2^23 for f32 grid math"
        n_tiles = -(-N // tile_rows)
        n_pad = n_tiles * tile_rows

        xr = jnp.transpose(xs[i], (0, 2, 3, 1)).reshape(N, C).astype(jnp.float32)
        x_slabs.append(jnp.pad(xr, ((0, n_pad - N), (0, noc_p - noc))))

        # Level-major tile ordering (do NOT interleave levels): keeps the block
        # index of W_eff / cst constant across consecutive steps so Pallas skips
        # re-fetching the weight tile.
        lvl_l += [i] * n_tiles
        rb_l += [t * tile_rows for t in range(n_tiles)]

        # fold ImplicitA -> conv -> ImplicitM -> conv into  x @ W_eff + b_eff
        w, b, ia, im = params[i]
        wt = w.reshape(noc, C).T.astype(jnp.float32)            # (C, noc)
        br = b.reshape(1, noc).astype(jnp.float32)
        iar = ia.reshape(1, C).astype(jnp.float32)
        imr = im.reshape(noc).astype(jnp.float32)
        w_eff = wt @ (imr[:, None] * wt)                        # Wt diag(im) Wt
        b_eff = (iar @ w_eff + (br * imr[None, :]) @ wt + br).reshape(noc)
        w_eff_l.append(jnp.pad(w_eff, ((0, noc_p - noc), (0, noc_p - noc))))

        anch4 = (jnp.ones((na, no), jnp.float32)
                 .at[:, 2:4].set(4.0 * anchors[i].astype(jnp.float32))).reshape(noc)
        cst3 = jnp.stack([
            jnp.pad(b_eff, (0, noc_p - noc)),
            jnp.pad(anch4, (0, noc_p - noc), constant_values=1.0),
            role,
        ])                                                      # (3, noc_p)
        cst_l.append(jnp.pad(cst3, ((0, 5), (0, 0))))           # (8, noc_p)

        s_f = float(strides[i])
        geom_l.append(np.array([1.0 / W, float(W), 1.0 / H, float(H),
                                s_f, 2.0 * s_f, -0.5 * s_f, 0.0], np.float32))

        level_meta.append((B, H, W, N, off))
        off += n_pad

    total_pad = off
    num_tiles = len(lvl_l)

    x_cat = jnp.concatenate(x_slabs, axis=0).astype(jnp.bfloat16)   # (total_pad, noc_p)
    w_eff_all = jnp.stack(w_eff_l).astype(jnp.bfloat16)             # (nl, noc_p, noc_p)
    cst_all = jnp.stack(cst_l)                                      # (nl, 8, noc_p) f32
    lvl_a = jnp.asarray(lvl_l, jnp.int32)
    rb_a = jnp.asarray(rb_l, jnp.int32)
    geom_a = jnp.asarray(np.concatenate(geom_l))                    # (nl*8,) f32

    # VMEM budget: double-buffered x(bf16) + raw(bf16) + dec(f32) tiles + weights.
    per_step = tile_rows * noc_p * (2 + 2 + 4) + noc_p * noc_p * 2 + 8 * noc_p * 4
    vmem_limit = int(min(max(4 * per_step, 8 << 20), 64 << 20))

    kernel = functools.partial(_idetect_kernel, tile_rows)
    raw_cat, dec_cat = pl.pallas_call(
        kernel,
        grid_spec=pltpu.PrefetchScalarGridSpec(
            num_scalar_prefetch=3,
            grid=(num_tiles,),
            in_specs=[
                pl.BlockSpec((tile_rows, noc_p), lambda i, *_: (i, 0)),
                pl.BlockSpec((None, noc_p, noc_p), lambda i, lvl, *_: (lvl[i], 0, 0)),
                pl.BlockSpec((None, 8, noc_p), lambda i, lvl, *_: (lvl[i], 0, 0)),
            ],
            out_specs=[
                pl.BlockSpec((tile_rows, noc_p), lambda i, *_: (i, 0)),
                pl.BlockSpec((tile_rows, noc_p), lambda i, *_: (i, 0)),
            ],
        ),
        out_shape=[
            jax.ShapeDtypeStruct((total_pad, noc_p), jnp.bfloat16),   # raw (bf16)
            jax.ShapeDtypeStruct((total_pad, noc_p), jnp.float32),    # decoded
        ],
        compiler_params=pltpu.CompilerParams(
            dimension_semantics=("parallel",),
            vmem_limit_bytes=vmem_limit),
    )(lvl_a, rb_a, geom_a, x_cat, w_eff_all, cst_all)

    # back to PyTorch's axis conventions (pad lanes / pad rows sliced off here)
    x_out, z = [], []
    for (B, H, W, N, o0) in level_meta:
        raw = (raw_cat[o0:o0 + N, :noc].astype(jnp.float32)
               .reshape(B, H, W, na, no).transpose(0, 3, 1, 2, 4))
        dec = (dec_cat[o0:o0 + N, :noc]
               .reshape(B, H, W, na, no).transpose(0, 3, 1, 2, 4))
        x_out.append(raw)
        z.append(dec.reshape(B, na * H * W, no))
    return jnp.concatenate(z, axis=1), x_out


# ----------------------------------------------------------------------------
# Pure-JAX reference (mirrors the PyTorch forward, eval mode) for verification.
# ----------------------------------------------------------------------------
def reference_level(x, w, b, ia, im, anchors_level, stride, na, no):
    B, C, H, W = x.shape

    def conv1x1(inp):
        return (jnp.einsum("bchw,oc->bohw", inp, w.reshape(-1, w.shape[1]))
                + b.reshape(1, -1, 1, 1))

    t = conv1x1(x + ia)
    t = t * im
    t = conv1x1(t)
    t = t.reshape(B, na, no, H, W).transpose(0, 1, 3, 4, 2)
    y = jax.nn.sigmoid(t)
    yv, xv = jnp.meshgrid(jnp.arange(H), jnp.arange(W), indexing="ij")
    grid = jnp.stack((xv, yv), 2).reshape(1, 1, H, W, 2).astype(jnp.float32)
    xy = (y[..., 0:2] * 2.0 - 0.5 + grid) * stride
    wh = (y[..., 2:4] * 2.0) ** 2 * anchors_level.reshape(1, na, 1, 1, 2)
    y = jnp.concatenate([xy, wh, y[..., 4:]], axis=-1)
    return t, y.reshape(B, -1, no)


if __name__ == "__main__":
    # synthetic config (ch[i] must equal na*no for this module's forward)
    nc, na, nl = 3, 3, 2
    no = nc + 5                      # 8
    noc = na * no                    # 24
    ch = [noc, noc]
    strides = [8.0, 16.0]
    anchors = jnp.array([[10, 13, 16, 30, 33, 23],
                         [30, 61, 62, 45, 59, 119]],
                        dtype=jnp.float32).reshape(nl, na, 2)

    key = jax.random.PRNGKey(0)
    keys = jax.random.split(key, 4 * nl + nl)

    params = []
    for i in range(nl):
        kw, kb, kia, kim = keys[4 * i:4 * i + 4]
        w = jax.random.normal(kw, (noc, ch[i], 1, 1), jnp.float32) * 0.05
        b = jax.random.normal(kb, (noc,), jnp.float32) * 0.01
        ia = jax.random.normal(kia, (1, ch[i], 1, 1), jnp.float32) * 0.02
        im = 1.0 + jax.random.normal(kim, (1, noc, 1, 1), jnp.float32) * 0.02
        params.append((w, b, ia, im))

    # two pyramid levels, NCHW; non-square + non-multiple-of-tile sizes so the
    # multi-tile / row- and lane-padding / in-kernel grid paths are exercised.
    xs = [
        jax.random.normal(keys[4 * nl + 0], (2, ch[0], 8, 6), jnp.float32),
        jax.random.normal(keys[4 * nl + 1], (2, ch[1], 6, 5), jnp.float32),
    ]

    # small tile_rows here (still a multiple of 8) to get >1 grid step at toy
    # sizes; production use keeps the default 1024 (re-derive for v7x VMEM).
    z_cat, x_list = idetect_forward(xs, params, anchors, strides, na, no,
                                    tile_rows=64)
    jax.block_until_ready(z_cat)
    for t in x_list:
        jax.block_until_ready(t)

    # verify against pure-JAX (f32) reference; bf16 streaming -> loosened tol
    z_ref, x_ref = [], []
    for i in range(nl):
        w, b, ia, im = params[i]
        t_r, y_r = reference_level(xs[i], w, b, ia, im, anchors[i],
                                   strides[i], na, no)
        x_ref.append(t_r)
        z_ref.append(y_r)
    z_ref = jnp.concatenate(z_ref, axis=1)

    assert z_cat.shape == (2, na * (8 * 6 + 6 * 5), no)
    for i in range(nl):
        assert x_list[i].shape == x_ref[i].shape
        assert jnp.allclose(x_list[i], x_ref[i], rtol=2e-2, atol=2e-2)
    assert jnp.allclose(z_cat, z_ref, rtol=2e-2, atol=2e-2)

    print("KERNEL_OK")
</pallas_src>

<mosaic_0001>
module attributes {stable_mosaic.version = 11 : i64} {
  func.func @_idetect_kernel(%arg0: i32, %arg1: memref<3xi32, #tpu.memory_space<smem>>, %arg2: memref<3xi32, #tpu.memory_space<smem>>, %arg3: memref<16xf32, #tpu.memory_space<smem>>, %arg4: memref<64x128xbf16, #tpu.memory_space<vmem>>, %arg5: memref<1x128x128xbf16, #tpu.memory_space<vmem>>, %arg6: memref<1x8x128xf32, #tpu.memory_space<vmem>>, %arg7: memref<64x128xbf16, #tpu.memory_space<vmem>>, %arg8: memref<64x128xf32, #tpu.memory_space<vmem>>) attributes {dimension_semantics = [#tpu.dimension_semantics<parallel>], iteration_bounds = array<i64: 3>, scalar_prefetch = 3 : i64, scratch_operands = 0 : i64, tpu.core_type = #tpu.core_type<tc>, window_params = [{transform_indices = @transform_0, window_bounds = array<i64: 64, 128>}, {transform_indices = @transform_1, window_bounds = array<i64: 1, 128, 128>}, {transform_indices = @transform_2, window_bounds = array<i64: 1, 8, 128>}, {transform_indices = @transform_3, window_bounds = array<i64: 64, 128>}, {transform_indices = @transform_4, window_bounds = array<i64: 64, 128>}]} {
    %0 = arith.index_cast %arg0 : i32 to index
    %1 = memref.load %arg1[%0] : memref<3xi32, #tpu.memory_space<smem>>
    %c8_i32 = arith.constant 8 : i32
    %2 = arith.muli %1, %c8_i32 : i32
    %c0_i32 = arith.constant 0 : i32
    %3 = arith.addi %2, %c0_i32 : i32
    %4 = arith.index_cast %3 : i32 to index
    %5 = memref.load %arg3[%4] : memref<16xf32, #tpu.memory_space<smem>>
    %c1_i32 = arith.constant 1 : i32
    %6 = arith.addi %2, %c1_i32 : i32
    %7 = arith.index_cast %6 : i32 to index
    %8 = memref.load %arg3[%7] : memref<16xf32, #tpu.memory_space<smem>>
    %c2_i32 = arith.constant 2 : i32
    %9 = arith.addi %2, %c2_i32 : i32
    %10 = arith.index_cast %9 : i32 to index
    %11 = memref.load %arg3[%10] : memref<16xf32, #tpu.memory_space<smem>>
    %c3_i32 = arith.constant 3 : i32
    %12 = arith.addi %2, %c3_i32 : i32
    %13 = arith.index_cast %12 : i32 to index
    %14 = memref.load %arg3[%13] : memref<16xf32, #tpu.memory_space<smem>>
    %c4_i32 = arith.constant 4 : i32
    %15 = arith.addi %2, %c4_i32 : i32
    %16 = arith.index_cast %15 : i32 to index
    %17 = memref.load %arg3[%16] : memref<16xf32, #tpu.memory_space<smem>>
    %c5_i32 = arith.constant 5 : i32
    %18 = arith.addi %2, %c5_i32 : i32
    %19 = arith.index_cast %18 : i32 to index
    %20 = memref.load %arg3[%19] : memref<16xf32, #tpu.memory_space<smem>>
    %c6_i32 = arith.constant 6 : i32
    %21 = arith.addi %2, %c6_i32 : i32
    %22 = arith.index_cast %21 : i32 to index
    %23 = memref.load %arg3[%22] : memref<16xf32, #tpu.memory_space<smem>>
    %24 = arith.index_cast %arg0 : i32 to index
    %25 = memref.load %arg2[%24] : memref<3xi32, #tpu.memory_space<smem>>
    %26 = arith.sitofp %25 : i32 to f32
    %c0 = arith.constant 0 : index
    %c0_0 = arith.constant 0 : index
    %c0_1 = arith.constant 0 : index
    %27 = vector.load %arg6[%c0, %c0_0, %c0_1] : memref<1x8x128xf32, #tpu.memory_space<vmem>>, vector<1x1x128xf32>
    %28 = vector.shape_cast %27 : vector<1x1x128xf32> to vector<1x128xf32>
    %c0_2 = arith.constant 0 : index
    %c1 = arith.constant 1 : index
    %c0_3 = arith.constant 0 : index
    %29 = vector.load %arg6[%c0_2, %c1, %c0_3] : memref<1x8x128xf32, #tpu.memory_space<vmem>>, vector<1x1x128xf32>
    %30 = vector.shape_cast %29 : vector<1x1x128xf32> to vector<1x128xf32>
    %c0_4 = arith.constant 0 : index
    %c2 = arith.constant 2 : index
    %c0_5 = arith.constant 0 : index
    %31 = vector.load %arg6[%c0_4, %c2, %c0_5] : memref<1x8x128xf32, #tpu.memory_space<vmem>>, vector<1x1x128xf32>
    %32 = vector.shape_cast %31 : vector<1x1x128xf32> to vector<1x128xf32>
    %cst = arith.constant 0.000000e+00 : f32
    %33 = vector.broadcast %cst : f32 to vector<1x128xf32>
    %34 = arith.cmpf oeq, %32, %33 : vector<1x128xf32>
    %cst_6 = arith.constant 1.000000e+00 : f32
    %35 = vector.broadcast %cst_6 : f32 to vector<1x128xf32>
    %36 = arith.cmpf oeq, %32, %35 : vector<1x128xf32>
    %cst_7 = arith.constant 2.000000e+00 : f32
    %37 = vector.broadcast %cst_7 : f32 to vector<1x128xf32>
    %38 = arith.cmpf olt, %32, %37 : vector<1x128xf32>
    %cst_8 = arith.constant 2.000000e+00 : f32
    %39 = vector.broadcast %cst_8 : f32 to vector<1x128xf32>
    %40 = arith.cmpf oeq, %32, %39 : vector<1x128xf32>
    %c0_9 = arith.constant 0 : index
    %c0_10 = arith.constant 0 : index
    %41 = vector.load %arg4[%c0_9, %c0_10] : memref<64x128xbf16, #tpu.memory_space<vmem>>, vector<64x128xbf16>
    %c0_11 = arith.constant 0 : index
    %c0_12 = arith.constant 0 : index
    %c0_13 = arith.constant 0 : index
    %42 = vector.load %arg5[%c0_11, %c0_12, %c0_13] : memref<1x128x128xbf16, #tpu.memory_space<vmem>>, vector<1x128x128xbf16>
    %43 = vector.shape_cast %42 : vector<1x128x128xbf16> to vector<128x128xbf16>
    %cst_14 = arith.constant dense<0.000000e+00> : vector<64x128xf32>
    %44 = tpu.matmul %41, %43, %cst_14 {dimension_numbers = #tpu.dot_dimension_numbers<[1], [0], [0], [1], [0, 0, 1, 1], [], []>} : vector<64x128xbf16>, vector<128x128xbf16>, vector<64x128xf32> -> vector<64x128xf32>
    %45 = vector.broadcast %28 : vector<1x128xf32> to vector<64x128xf32>
    %46 = arith.addf %44, %45 : vector<64x128xf32>
    %47 = arith.truncf %46 : vector<64x128xf32> to vector<64x128xbf16>
    %c0_15 = arith.constant 0 : index
    %c0_16 = arith.constant 0 : index
    %48 = vector.load %arg7[%c0_15, %c0_16] : memref<64x128xbf16, #tpu.memory_space<vmem>>, vector<64x128xbf16>
    tpu.vector_store %arg7[%c0_15, %c0_16], %47 {strides = array<i32>} : memref<64x128xbf16, #tpu.memory_space<vmem>>, vector<64x128xbf16>,
    %49 = arith.negf %46 : vector<64x128xf32>
    %50 = math.exp %49 : vector<64x128xf32>
    %cst_17 = arith.constant 1.000000e+00 : f32
    %51 = vector.broadcast %cst_17 : f32 to vector<64x128xf32>
    %52 = arith.addf %51, %50 : vector<64x128xf32>
    %53 = arith.divf %51, %52 : vector<64x128xf32>
    %54 = tpu.iota {dimensions = array<i32: 0>} : vector<64x1xi32>
    %55 = arith.sitofp %54 : vector<64x1xi32> to vector<64x1xf32>
    %56 = vector.broadcast %26 : f32 to vector<64x1xf32>
    %57 = arith.addf %56, %55 : vector<64x1xf32>
    %cst_18 = arith.constant 5.000000e-01 : f32
    %58 = vector.broadcast %cst_18 : f32 to vector<64x1xf32>
    %59 = arith.addf %57, %58 : vector<64x1xf32>
    %60 = vector.broadcast %5 : f32 to vector<64x1xf32>
    %61 = arith.mulf %59, %60 : vector<64x1xf32>
    %62 = math.floor %61 : vector<64x1xf32>
    %63 = vector.broadcast %8 : f32 to vector<64x1xf32>
    %64 = arith.mulf %62, %63 : vector<64x1xf32>
    %65 = arith.subf %57, %64 : vector<64x1xf32>
    %cst_19 = arith.constant 5.000000e-01 : f32
    %66 = vector.broadcast %cst_19 : f32 to vector<64x1xf32>
    %67 = arith.addf %62, %66 : vector<64x1xf32>
    %68 = vector.broadcast %11 : f32 to vector<64x1xf32>
    %69 = arith.mulf %67, %68 : vector<64x1xf32>
    %70 = math.floor %69 : vector<64x1xf32>
    %71 = vector.broadcast %14 : f32 to vector<64x1xf32>
    %72 = arith.mulf %70, %71 : vector<64x1xf32>
    %73 = arith.subf %62, %72 : vector<64x1xf32>
    %74 = vector.broadcast %17 : f32 to vector<64x1xf32>
    %75 = arith.mulf %65, %74 : vector<64x1xf32>
    %76 = vector.broadcast %23 : f32 to vector<64x1xf32>
    %77 = arith.addf %75, %76 : vector<64x1xf32>
    %78 = vector.broadcast %17 : f32 to vector<64x1xf32>
    %79 = arith.mulf %73, %78 : vector<64x1xf32>
    %80 = vector.broadcast %23 : f32 to vector<64x1xf32>
    %81 = arith.addf %79, %80 : vector<64x1xf32>
    %cst_20 = arith.constant 0.000000e+00 : f32
    %82 = vector.shape_cast %36 : vector<1x128xi1> to vector<1x128xi1>
    %83 = vector.broadcast %82 : vector<1x128xi1> to vector<64x128xi1>
    %84 = vector.shape_cast %81 : vector<64x1xf32> to vector<64x1xf32>
    %85 = vector.broadcast %84 : vector<64x1xf32> to vector<64x128xf32>
    %86 = vector.broadcast %cst_20 : f32 to vector<64x128xf32>
    %87 = arith.select %83, %85, %86 : vector<64x128xi1>, vector<64x128xf32>
    %88 = vector.shape_cast %34 : vector<1x128xi1> to vector<1x128xi1>
    %89 = vector.broadcast %88 : vector<1x128xi1> to vector<64x128xi1>
    %90 = vector.shape_cast %77 : vector<64x1xf32> to vector<64x1xf32>
    %91 = vector.broadcast %90 : vector<64x1xf32> to vector<64x128xf32>
    %92 = arith.select %89, %91, %87 : vector<64x128xi1>, vector<64x128xf32>
    %93 = vector.broadcast %20 : f32 to vector<64x128xf32>
    %94 = arith.mulf %53, %93 : vector<64x128xf32>
    %95 = arith.addf %94, %92 : vector<64x128xf32>
    %96 = arith.mulf %53, %53 : vector<64x128xf32>
    %97 = vector.broadcast %30 : vector<1x128xf32> to vector<64x128xf32>
    %98 = arith.mulf %96, %97 : vector<64x128xf32>
    %99 = vector.shape_cast %40 : vector<1x128xi1> to vector<1x128xi1>
    %100 = vector.broadcast %99 : vector<1x128xi1> to vector<64x128xi1>
    %101 = arith.select %100, %98, %53 : vector<64x128xi1>, vector<64x128xf32>
    %102 = vector.shape_cast %38 : vector<1x128xi1> to vector<1x128xi1>
    %103 = vector.broadcast %102 : vector<1x128xi1> to vector<64x128xi1>
    %104 = arith.select %103, %95, %101 : vector<64x128xi1>, vector<64x128xf32>
    %c0_21 = arith.constant 0 : index
    %c0_22 = arith.constant 0 : index
    %105 = vector.load %arg8[%c0_21, %c0_22] : memref<64x128xf32, #tpu.memory_space<vmem>>, vector<64x128xf32>
    tpu.vector_store %arg8[%c0_21, %c0_22], %104 {strides = array<i32>} : memref<64x128xf32, #tpu.memory_space<vmem>>, vector<64x128xf32>,
    return
  }
  func.func @transform_0(%arg0: i32, %arg1: memref<3xi32, #tpu.memory_space<smem>>, %arg2: memref<3xi32, #tpu.memory_space<smem>>, %arg3: memref<16xf32, #tpu.memory_space<smem>>) -> (i32, i32) {
    %c0_i32 = arith.constant 0 : i32
    %c0_i32_0 = arith.constant 0 : i32
    return %arg0, %c0_i32 : i32, i32
  }
  func.func @transform_1(%arg0: i32, %arg1: memref<3xi32, #tpu.memory_space<smem>>, %arg2: memref<3xi32, #tpu.memory_space<smem>>, %arg3: memref<16xf32, #tpu.memory_space<smem>>) -> (i32, i32, i32) {
    %0 = arith.index_cast %arg0 : i32 to index
    %1 = memref.load %arg1[%0] : memref<3xi32, #tpu.memory_space<smem>>
    %c0_i32 = arith.constant 0 : i32
    %c0_i32_0 = arith.constant 0 : i32
    %c0_i32_1 = arith.constant 0 : i32
    return %1, %c0_i32, %c0_i32_0 : i32, i32, i32
  }
  func.func @transform_2(%arg0: i32, %arg1: memref<3xi32, #tpu.memory_space<smem>>, %arg2: memref<3xi32, #tpu.memory_space<smem>>, %arg3: memref<16xf32, #tpu.memory_space<smem>>) -> (i32, i32, i32) {
    %0 = arith.index_cast %arg0 : i32 to index
    %1 = memref.load %arg1[%0] : memref<3xi32, #tpu.memory_space<smem>>
    %c0_i32 = arith.constant 0 : i32
    %c0_i32_0 = arith.constant 0 : i32
    %c0_i32_1 = arith.constant 0 : i32
    return %1, %c0_i32, %c0_i32_0 : i32, i32, i32
  }
  func.func @transform_3(%arg0: i32, %arg1: memref<3xi32, #tpu.memory_space<smem>>, %arg2: memref<3xi32, #tpu.memory_space<smem>>, %arg3: memref<16xf32, #tpu.memory_space<smem>>) -> (i32, i32) {
    %c0_i32 = arith.constant 0 : i32
    %c0_i32_0 = arith.constant 0 : i32
    return %arg0, %c0_i32 : i32, i32
  }
  func.func @transform_4(%arg0: i32, %arg1: memref<3xi32, #tpu.memory_space<smem>>, %arg2: memref<3xi32, #tpu.memory_space<smem>>, %arg3: memref<16xf32, #tpu.memory_space<smem>>) -> (i32, i32) {
    %c0_i32 = arith.constant 0 : i32
    %c0_i32_0 = arith.constant 0 : i32
    return %arg0, %c0_i32 : i32, i32
  }
}

</mosaic_0001>

<llo_original>
// kernel: tpu_custom_call.1
$region0: #{tpu_custom_call.1}
  #allocation0 [shape = 'u32[]', space=smem, size = 0x4, offset = 0x4, fixed_abs, tag = 'smem constant byte address 0x4 - core index']
  #allocation1 [shape = 'u32[144,128]{1,0:T(1,128)}', space=vmem, size = 0x12000, scoped, tag = 'internal scratch']
  #allocation2 [shape = 's32[1]{0}', space=sflag, size = 0x4, scoped, tag = 'scoped memory for tpu_custom_call.1']
  #allocation3 [shape = 'u8[512]{0}', space=smem, size = 0x200, scoped, tag = 'prefetched SMEM operand 0']
  #allocation4 [shape = 'u8[512]{0}', space=smem, size = 0x200, scoped, tag = 'prefetched SMEM operand 1']
  #allocation5 [shape = 'u8[512]{0}', space=smem, size = 0x200, scoped, tag = 'prefetched SMEM operand 2']
  %s0 = inlined_call_operand.hbm [shape: s32[3], index: 0, kind: input, shape index: {}]
  %s1 = inlined_call_operand.vmem [shape: s32[3], index: 1, kind: input, shape index: {}]
  %s2 = inlined_call_operand.vmem [shape: f32[16], index: 2, kind: input, shape index: {}]
  %s3 = inlined_call_operand.hbm [shape: bf16[192,128], index: 3, kind: input, shape index: {}]
  %s4 = inlined_call_operand.hbm [shape: bf16[2,128,128], index: 4, kind: input, shape index: {}]
  %s5 = inlined_call_operand.hbm [shape: f32[2,8,128], index: 5, kind: input, shape index: {}]
  %s6 = inlined_call_operand.hbm [shape: bf16[192,128], index: 6, kind: output, shape index: {0}]
  %s7 = inlined_call_operand.hbm [shape: f32[192,128], index: 7, kind: output, shape index: {1}]
  %8 = xla_tuple %s6, %s7
  %s9 = sld [smem:[#allocation0]]
  $region65: #{tpu_custom_call.1} parent=0
    _
  %s11 = ssub.s32 1, %s9
  %s12 = scalar_select 0, %s11, %s9
  %14 = dma.hbm_to_smem %s0, 16, [#allocation3], [#allocation2]
  %s15 = sshll.u32 %s1, 4
  %s16 = int_to_ptr.vmem [resolvable:$true] %s15
  %18 = dma.vmem_to_smem %s16, 16, [#allocation4], [#allocation2]
  %s19 = sshll.u32 %s2, 4
  %s20 = int_to_ptr.vmem [resolvable:$true] %s19
  %22 = dma.vmem_to_smem %s20, 16, [#allocation5], [#allocation2]
  %23 = dma.done [#allocation2], 48
  %24 = sfence
  $region1: #{tpu_custom_call.1} parent=0
    #allocation6 [shape = 'u8[32768]{0}', space=vmem, size = 0x8000, scoped, tag = 'input window, operand 3']
    #allocation7 [shape = 's32[2]{0}', space=sflag, size = 0x8, scoped, tag = 'scoped memory for tpu_custom_call.1']
    #allocation8 [shape = 's32[2]{0}', space=sflag, size = 0x8, scoped, tag = 'scoped memory for tpu_custom_call.1']
    #allocation9 [shape = 'u8[65536]{0}', space=vmem, size = 0x10000, scoped, tag = 'input window, operand 4']
    #allocation10 [shape = 's32[2]{0}', space=sflag, size = 0x8, scoped, tag = 'scoped memory for tpu_custom_call.1']
    #allocation11 [shape = 'u8[8192]{0}', space=vmem, size = 0x2000, scoped, tag = 'input window, operand 5']
    #allocation12 [shape = 'u8[32768]{0}', space=vmem, size = 0x8000, scoped, tag = 'output window, operand 0']
    #allocation13 [shape = 'u8[65536]{0}', space=vmem, size = 0x10000, scoped, tag = 'output window, operand 1']
    #allocation14 [shape = 's32[2]{0}', space=sflag, size = 0x8, scoped, tag = 'scoped memory for tpu_custom_call.1']
    %25 = vsyncpa [#allocation7], 0
    %s26 = scalar_lea.sflag [#allocation7], 1
    %27 = vsyncpa %s26, 0
    %28 = vsyncpa [#allocation10], 0
    %s29 = scalar_lea.sflag [#allocation10], 1
    %30 = vsyncpa %s29, 0
    %31 = vsyncpa [#allocation8], 0
    %s32 = scalar_lea.sflag [#allocation8], 1
    %33 = vsyncpa %s32, 0
    %34 = vsyncpa [#allocation14], 0
    %s35 = scalar_lea.sflag [#allocation14], 1
    %36 = vsyncpa %s35, 0
    loop: start=0, step=1, limit=5
    $region2: #{tpu_custom_call.1} parent=1 // loop_pre_header
      _
    $region3: #{tpu_custom_call.1} parent=1 // loop_header
      %s38 = sphi 0, %s42
      %p39 = scmp.ge.s32.totalorder %s38, 5
      %s48 = sphi 0, %s50
      %s51 = sphi 0, %s48
      %s52 = sphi 0, %s51
      %s68 = sphi 0, %s52
      %s76 = sphi 0, %s78
      %s79 = sphi 0, %s76
      %s80 = sphi 0, %s79
      %s96 = sphi 0, %s80
      %s104 = sphi 0, %s106
      %s107 = sphi 0, %s104
      %s108 = sphi 0, %s107
      %s124 = sphi 0, %s108
      %s130 = sphi 0, %s132
      %s133 = sphi 0, %s130
      %s134 = sphi 0, %s133
      %s150 = sphi 0, %s134
      %s156 = sphi 0, %s158
      %s159 = sphi 0, %s156
      %s160 = sphi 0, %s159
      %s176 = sphi 0, %s160
    $region4: #{tpu_custom_call.1} parent=1 // loop_header_branch
      %41 = sbr.rel (%p39) target = $region8
    $region5: #{tpu_custom_call.1} parent=1 // loop_body
      %s43 = ssub.s32 %s38, 1
      %s44 = ssub.s32 %s38, 2
      %s45 = sadd.s32 %s38, 1
      %s46 = ssub.s32 %s38, %s45
      %p47 = scmp.eq.s32.totalorder %s46, 0
      %s49 = sadd.s32 %s48, 1
      %s50 = scalar_select %p47, %s48, %s49
      %p53 = pneg %p47
      %p54 = scmp.eq.s32.totalorder %s38, 2
      %p55 = por %p53, %p54
      %p56 = scmp.ne.s32.totalorder %s48, %s51
      %p57 = scmp.eq.s32.totalorder %s38, 0
      %p58 = por %p56, %p57
      %p59 = scmp.ne.s32.totalorder %s48, %s51
      %p60 = scmp.eq.s32.totalorder %s43, 2
      %p61 = por %p59, %p60
      %p62 = scmp.ne.s32.totalorder %s51, %s52
      %p63 = scmp.eq.s32.totalorder %s43, 0
      %p64 = por %p62, %p63
      %p65 = scmp.ne.s32.totalorder %s51, %s52
      %p66 = scmp.eq.s32.totalorder %s44, 2
      %p67 = por %p65, %p66
      %p69 = scmp.ne.s32.totalorder %s52, %s68
      %p70 = scmp.eq.s32.totalorder %s44, 0
      %p71 = por %p69, %p70
      %s72 = sld [smem:[#allocation3 + %s38]]
      %s73 = sld [smem:[#allocation3 + %s45]]
      %s74 = ssub.s32 %s72, %s73
      %p75 = scmp.eq.s32.totalorder %s74, 0
      %s77 = sadd.s32 %s76, 1
      %s78 = scalar_select %p75, %s76, %s77
      %p81 = pneg %p75
      %p82 = scmp.eq.s32.totalorder %s38, 2
      %p83 = por %p81, %p82
      %p84 = scmp.ne.s32.totalorder %s76, %s79
      %p85 = scmp.eq.s32.totalorder %s38, 0
      %p86 = por %p84, %p85
      %p87 = scmp.ne.s32.totalorder %s76, %s79
      %p88 = scmp.eq.s32.totalorder %s43, 2
      %p89 = por %p87, %p88
      %p90 = scmp.ne.s32.totalorder %s79, %s80
      %p91 = scmp.eq.s32.totalorder %s43, 0
      %p92 = por %p90, %p91
      %p93 = scmp.ne.s32.totalorder %s79, %s80
      %p94 = scmp.eq.s32.totalorder %s44, 2
      %p95 = por %p93, %p94
      %p97 = scmp.ne.s32.totalorder %s80, %s96
      %p98 = scmp.eq.s32.totalorder %s44, 0
      %p99 = por %p97, %p98
      %s100 = sld [smem:[#allocation3 + %s38]]
      %s101 = sld [smem:[#allocation3 + %s45]]
      %s102 = ssub.s32 %s100, %s101
      %p103 = scmp.eq.s32.totalorder %s102, 0
      %s105 = sadd.s32 %s104, 1
      %s106 = scalar_select %p103, %s104, %s105
      %p109 = pneg %p103
      %p110 = scmp.eq.s32.totalorder %s38, 2
      %p111 = por %p109, %p110
      %p112 = scmp.ne.s32.totalorder %s104, %s107
      %p113 = scmp.eq.s32.totalorder %s38, 0
      %p114 = por %p112, %p113
      %p115 = scmp.ne.s32.totalorder %s104, %s107
      %p116 = scmp.eq.s32.totalorder %s43, 2
      %p117 = por %p115, %p116
      %p118 = scmp.ne.s32.totalorder %s107, %s108
      %p119 = scmp.eq.s32.totalorder %s43, 0
      %p120 = por %p118, %p119
      %p121 = scmp.ne.s32.totalorder %s107, %s108
      %p122 = scmp.eq.s32.totalorder %s44, 2
      %p123 = por %p121, %p122
      %p125 = scmp.ne.s32.totalorder %s108, %s124
      %p126 = scmp.eq.s32.totalorder %s44, 0
      %p127 = por %p125, %p126
      %s128 = ssub.s32 %s38, %s45
      %p129 = scmp.eq.s32.totalorder %s128, 0
      %s131 = sadd.s32 %s130, 1
      %s132 = scalar_select %p129, %s130, %s131
      %p135 = pneg %p129
      %p136 = scmp.eq.s32.totalorder %s38, 2
      %p137 = por %p135, %p136
      %p138 = scmp.ne.s32.totalorder %s130, %s133
      %p139 = scmp.eq.s32.totalorder %s38, 0
      %p140 = por %p138, %p139
      %p141 = scmp.ne.s32.totalorder %s130, %s133
      %p142 = scmp.eq.s32.totalorder %s43, 2
      %p143 = por %p141, %p142
      %p144 = scmp.ne.s32.totalorder %s133, %s134
      %p145 = scmp.eq.s32.totalorder %s43, 0
      %p146 = por %p144, %p145
      %p147 = scmp.ne.s32.totalorder %s133, %s134
      %p148 = scmp.eq.s32.totalorder %s44, 2
      %p149 = por %p147, %p148
      %p151 = scmp.ne.s32.totalorder %s134, %s150
      %p152 = scmp.eq.s32.totalorder %s44, 0
      %p153 = por %p151, %p152
      %s154 = ssub.s32 %s38, %s45
      %p155 = scmp.eq.s32.totalorder %s154, 0
      %s157 = sadd.s32 %s156, 1
      %s158 = scalar_select %p155, %s156, %s157
      %p161 = pneg %p155
      %p162 = scmp.eq.s32.totalorder %s38, 2
      %p163 = por %p161, %p162
      %p164 = scmp.ne.s32.totalorder %s156, %s159
      %p165 = scmp.eq.s32.totalorder %s38, 0
      %p166 = por %p164, %p165
      %p167 = scmp.ne.s32.totalorder %s156, %s159
      %p168 = scmp.eq.s32.totalorder %s43, 2
      %p169 = por %p167, %p168
      %p170 = scmp.ne.s32.totalorder %s159, %s160
      %p171 = scmp.eq.s32.totalorder %s43, 0
      %p172 = por %p170, %p171
      %p173 = scmp.ne.s32.totalorder %s159, %s160
      %p174 = scmp.eq.s32.totalorder %s44, 2
      %p175 = por %p173, %p174
      %p177 = scmp.ne.s32.totalorder %s160, %s176
      %p178 = scmp.eq.s32.totalorder %s44, 0
      %p179 = por %p177, %p178
      %p180 = scmp.le.s32.totalorder 1, %s38
      %p181 = scmp.lt.s32.totalorder %s38, 4
      %p182 = pnand %p180, %p181
      %p183 = pneg %p182
      // Predicated region
      $region9: #{tpu_custom_call.1} parent=5 // pred_check
        _
      $region10: #{tpu_custom_call.1} parent=5 // pred_check_branch
        %185 = sbr.rel (%p182) target = $region12
      $region11: #{tpu_custom_call.1} parent=5 // pred_region
        %s186 = ssub.s32 %s38, 1
      $region12: #{tpu_custom_call.1} parent=5 // pred_fallthru
        _
      %p187 = scmp.lt.s32.totalorder %s38, 3
      // Predicated region
      $region13: #{tpu_custom_call.1} parent=5 // pred_check
        %p188 = pneg %p187
      $region14: #{tpu_custom_call.1} parent=5 // pred_check_branch
        %190 = sbr.rel (%p188) target = $region16
      $region15: #{tpu_custom_call.1} parent=5 // pred_region
        // Predicated region
        $region17: #{tpu_custom_call.1} parent=15 // pred_check
          %p191 = pneg %p58
        $region18: #{tpu_custom_call.1} parent=15 // pred_check_branch
          %193 = sbr.rel (%p191) target = $region20
        $region19: #{tpu_custom_call.1} parent=15 // pred_region
          %s194 = sand.u32 %s48, 1
          %s195 = scalar_lea.sflag [#allocation7], %s194
          %s196 = sand.u32 %s48, 1
          %s197 = smul.addr %s196, 32
          %s198 = scalar_lea.vmem [#allocation6], %s197
          %s199 = smul.u32 8, %s38
          %s201 = ssub.s32 512, 512
          %202 = vsyncadd %s195, %s201
          %s203 = smul.addr %s199, 64
          %s204 = scalar_lea.hbm %s3, %s203
          %s205 = sshll.u32 %s198, 4
          %s206 = int_to_ptr.vmem [resolvable:$true] %s205
          %211 = dma.hbm_to_vmem [thread:$0]  %s204, 512, %s206, %s195, 64, 64, 4
        $region20: #{tpu_custom_call.1} parent=15 // pred_fallthru
          _
        // Predicated region
        $region21: #{tpu_custom_call.1} parent=15 // pred_check
          %p212 = pneg %p86
        $region22: #{tpu_custom_call.1} parent=15 // pred_check_branch
          %214 = sbr.rel (%p212) target = $region24
        $region23: #{tpu_custom_call.1} parent=15 // pred_region
          %s215 = sand.u32 %s38, 1
          %s216 = scalar_lea.sflag [#allocation10], %s215
          %s217 = sand.u32 %s76, 1
          %s218 = smul.addr %s217, 64
          %s219 = scalar_lea.vmem [#allocation9], %s218
          %s220 = sld [smem:[#allocation3 + %s38]]
          %s222 = ssub.s32 1024, 1024
          %223 = vsyncadd %s216, %s222
          %s224 = smul.addr %s220, 16
          %s225 = smul.addr %s224, 64
          %s226 = scalar_lea.hbm %s4, %s225
          %s227 = sshll.u32 %s219, 4
          %s228 = int_to_ptr.vmem [resolvable:$true] %s227
          %233 = dma.hbm_to_vmem [thread:$0]  %s226, 1024, %s228, %s216, 64, 64, 4
        $region24: #{tpu_custom_call.1} parent=15 // pred_fallthru
          _
        // Predicated region
        $region25: #{tpu_custom_call.1} parent=15 // pred_check
          %p234 = pneg %p114
        $region26: #{tpu_custom_call.1} parent=15 // pred_check_branch
          %236 = sbr.rel (%p234) target = $region28
        $region27: #{tpu_custom_call.1} parent=15 // pred_region
          %s237 = sand.u32 %s38, 1
          %s238 = scalar_lea.sflag [#allocation10], %s237
          %s239 = sand.u32 %s104, 1
          %s240 = smul.addr %s239, 8
          %s241 = scalar_lea.vmem [#allocation11], %s240
          %s242 = sld [smem:[#allocation3 + %s38]]
          %s244 = ssub.s32 128, 128
          %245 = vsyncadd %s238, %s244
          %s246 = smul.addr %s242, 128
          %s247 = scalar_lea.hbm %s5, %s246
          %s249 = sshll.u32 %s241, 4
          %s250 = int_to_ptr.vmem [resolvable:$true] %s249
          %252 = dma.hbm_to_vmem [thread:$0]  %s247, 128, %s250, %s238
        $region28: #{tpu_custom_call.1} parent=15 // pred_fallthru
          _
      $region16: #{tpu_custom_call.1} parent=5 // pred_fallthru
        _
      %p253 = scmp.le.s32.totalorder 1, %s38
      %p254 = scmp.lt.s32.totalorder %s38, 4
      %p255 = pnand %p253, %p254
      %p256 = pneg %p255
      // Predicated region
      $region29: #{tpu_custom_call.1} parent=5 // pred_check
        _
      $region30: #{tpu_custom_call.1} parent=5 // pred_check_branch
        %258 = sbr.rel (%p255) target = $region32
      $region31: #{tpu_custom_call.1} parent=5 // pred_region
        %s259 = ssub.s32 %s38, 1
        %s260 = sand.u32 %s51, 1
        %s261 = scalar_lea.sflag [#allocation7], %s260
        %s262 = sand.u32 %s51, 1
        %s263 = smul.addr %s262, 32
        %s264 = scalar_lea.vmem [#allocation6], %s263
        // Predicated region
        $region33: #{tpu_custom_call.1} parent=31 // pred_check
          %p265 = pneg %p64
        $region34: #{tpu_custom_call.1} parent=31 // pred_check_branch
          %267 = sbr.rel (%p265) target = $region36
        $region35: #{tpu_custom_call.1} parent=31 // pred_region
          %268 = dma.done %s261, 512
        $region36: #{tpu_custom_call.1} parent=31 // pred_fallthru
          _
        %s269 = sand.u32 %s43, 1
        %s270 = scalar_lea.sflag [#allocation10], %s269
        %s271 = sand.u32 %s79, 1
        %s272 = smul.addr %s271, 64
        %s273 = scalar_lea.vmem [#allocation9], %s272
        // Predicated region
        $region37: #{tpu_custom_call.1} parent=31 // pred_check
          %p274 = pneg %p92
        $region38: #{tpu_custom_call.1} parent=31 // pred_check_branch
          %276 = sbr.rel (%p274) target = $region40
        $region39: #{tpu_custom_call.1} parent=31 // pred_region
          %277 = dma.done %s270, 1024
        $region40: #{tpu_custom_call.1} parent=31 // pred_fallthru
          _
        %s278 = sand.u32 %s43, 1
        %s279 = scalar_lea.sflag [#allocation10], %s278
        %s280 = sand.u32 %s107, 1
        %s281 = smul.addr %s280, 8
        %s282 = scalar_lea.vmem [#allocation11], %s281
        // Predicated region
        $region41: #{tpu_custom_call.1} parent=31 // pred_check
          %p283 = pneg %p120
        $region42: #{tpu_custom_call.1} parent=31 // pred_check_branch
          %285 = sbr.rel (%p283) target = $region44
        $region43: #{tpu_custom_call.1} parent=31 // pred_region
          %286 = dma.done %s279, 128
        $region44: #{tpu_custom_call.1} parent=31 // pred_fallthru
          _
        %s287 = sand.u32 %s51, 1
        %s288 = scalar_lea.sflag [#allocation7], %s287
        %s289 = sand.u32 %s51, 1
        %s290 = smul.addr %s289, 32
        %s291 = scalar_lea.vmem [#allocation6], %s290
        %p292 = pneg %p64
        %p293 = pneg %p61
        %s294 = sand.u32 %s43, 1
        %s295 = scalar_lea.sflag [#allocation10], %s294
        %s296 = sand.u32 %s79, 1
        %s297 = smul.addr %s296, 64
        %s298 = scalar_lea.vmem [#allocation9], %s297
        %p299 = pneg %p92
        %p300 = pneg %p89
        %s301 = sand.u32 %s43, 1
        %s302 = scalar_lea.sflag [#allocation10], %s301
        %s303 = sand.u32 %s107, 1
        %s304 = smul.addr %s303, 8
        %s305 = scalar_lea.vmem [#allocation11], %s304
        %p306 = pneg %p120
        %p307 = pneg %p117
        %p308 = pneg %p146
        %p309 = pneg %p143
        %s310 = sand.u32 %s133, 1
        %s311 = scalar_lea.sflag [#allocation8], %s310
        %s312 = sand.u32 %s133, 1
        %s313 = smul.addr %s312, 32
        %s314 = scalar_lea.vmem [#allocation12], %s313
        %p315 = pneg %p172
        %p316 = pneg %p169
        %s317 = sand.u32 %s159, 1
        %s318 = scalar_lea.sflag [#allocation14], %s317
        %s319 = sand.u32 %s159, 1
        %s320 = smul.addr %s319, 64
        %s321 = scalar_lea.vmem [#allocation13], %s320
        %s322 = smul.u32 8, %s43
        %s323 = sld [smem:[#allocation3 + %s43]]
        %s324 = sld [smem:[#allocation3 + %s43]]
        %s325 = smul.u32 8, %s43
        %s326 = smul.u32 8, %s43
        %s328 = sld [smem:[#allocation3 + %s43]]
        %s329 = smul.u32 %s328, 8
        %s330 = sld [smem:[#allocation5 + %s329]]
        %s331 = sadd.s32 %s329, 1
        %s332 = sld [smem:[#allocation5 + %s331]]
        %s333 = sadd.s32 %s329, 2
        %s334 = sld [smem:[#allocation5 + %s333]]
        %s335 = sadd.s32 %s329, 3
        %s336 = sld [smem:[#allocation5 + %s335]]
        %s337 = sadd.s32 %s329, 4
        %s338 = sld [smem:[#allocation5 + %s337]]
        %s339 = sadd.s32 %s329, 5
        %s340 = sld [smem:[#allocation5 + %s339]]
        %s341 = sadd.s32 %s329, 6
        %s342 = sld [smem:[#allocation5 + %s341]]
        %s343 = sld [smem:[#allocation4 + %s43]]
        %s344 = scvt.s32.f32 %s343
        %v345 = vld [vmem:[%s282] sm:$0x1]
        %v346 = vld [vmem:[%s282 + $0x1] sm:$0x1]
        %v347 = vld [vmem:[%s282 + $0x2] sm:$0x1]
        %vm348 = vcmp.eq.f32.partialorder %v347, 0.0
        %vm349 = vcmp.eq.f32.partialorder %v347, 1.0
        %vm350 = vcmp.lt.f32.partialorder %v347, 2.0
        %vm351 = vcmp.eq.f32.partialorder %v347, 2.0
        %v352 = vld [vmem:[%s264] sm:$0xf]
        %v353 = vld [vmem:[%s264 + $0x4] sm:$0xf]
        %v354 = vld [vmem:[%s264 + $0x8] sm:$0xf]
        %v355 = vld [vmem:[%s264 + $0xc] sm:$0xf]
        %v356 = vld [vmem:[%s264 + $0x10] sm:$0xf]
        %v357 = vld [vmem:[%s264 + $0x14] sm:$0xf]
        %v358 = vld [vmem:[%s264 + $0x18] sm:$0xf]
        %v359 = vld [vmem:[%s264 + $0x1c] sm:$0xf]
        %v360 = vld [vmem:[%s273] sm:$0xf]
        %v361 = vld [vmem:[%s273 + $0x4] sm:$0xf]
        %v362 = vld [vmem:[%s273 + $0x8] sm:$0xf]
        %v363 = vld [vmem:[%s273 + $0xc] sm:$0xf]
        %v364 = vld [vmem:[%s273 + $0x10] sm:$0xf]
        %v365 = vld [vmem:[%s273 + $0x14] sm:$0xf]
        %v366 = vld [vmem:[%s273 + $0x18] sm:$0xf]
        %v367 = vld [vmem:[%s273 + $0x1c] sm:$0xf]
        %v368 = vld [vmem:[%s273 + $0x20] sm:$0xf]
        %v369 = vld [vmem:[%s273 + $0x24] sm:$0xf]
        %v370 = vld [vmem:[%s273 + $0x28] sm:$0xf]
        %v371 = vld [vmem:[%s273 + $0x2c] sm:$0xf]
        %v372 = vld [vmem:[%s273 + $0x30] sm:$0xf]
        %v373 = vld [vmem:[%s273 + $0x34] sm:$0xf]
        %v374 = vld [vmem:[%s273 + $0x38] sm:$0xf]
        %v375 = vld [vmem:[%s273 + $0x3c] sm:$0xf]
        %v376 = vlaneseq
        %v377 = vshrl.u32 %v376, 7
        %v378 = vsub.s32 0, %v377
        %v379 = vrot.slane %v345, %v378
        %v388 = vunpack.c.l.b16 %v352
        %v389 = vunpack.c.l.b16 %v353
        %v390 = vunpack.c.l.b16 %v354
        %v391 = vunpack.c.l.b16 %v355
        %v392 = vunpack.c.l.b16 %v356
        %v393 = vunpack.c.l.b16 %v357
        %v394 = vunpack.c.l.b16 %v358
        %v395 = vunpack.c.l.b16 %v359
        %v396 = vpack.c.b16 %v389, %v388
        %v397 = vpack.c.b16 %v391, %v390
        %v398 = vpack.c.b16 %v393, %v392
        %v399 = vpack.c.b16 %v395, %v394
        %v420 = vunpack.c.l.b16 %v360
        %v421 = vunpack.c.l.b16 %v361
        %v422 = vunpack.c.l.b16 %v362
        %v423 = vunpack.c.l.b16 %v363
        %v424 = vunpack.c.l.b16 %v364
        %v425 = vunpack.c.l.b16 %v365
        %v426 = vunpack.c.l.b16 %v366
        %v427 = vunpack.c.l.b16 %v367
        %v428 = vunpack.c.l.b16 %v368
        %v429 = vunpack.c.l.b16 %v369
        %v430 = vunpack.c.l.b16 %v370
        %v431 = vunpack.c.l.b16 %v371
        %v432 = vunpack.c.l.b16 %v372
        %v433 = vunpack.c.l.b16 %v373
        %v434 = vunpack.c.l.b16 %v374
        %v435 = vunpack.c.l.b16 %v375
        %v436 = vpack.c.b16 %v421, %v420
        %v437 = vpack.c.b16 %v423, %v422
        %v438 = vpack.c.b16 %v425, %v424
        %v439 = vpack.c.b16 %v427, %v426
        %v440 = vpack.c.b16 %v429, %v428
        %v441 = vpack.c.b16 %v431, %v430
        %v442 = vpack.c.b16 %v433, %v432
        %v443 = vpack.c.b16 %v435, %v434
        %452 = vmatprep.subr.bf16.mxu0 0
        %453 = vmatpush1.bf16.msra.mxu0 %v443
        %454 = vmatprep.subr.bf16.mxu0 0
        %455 = vmatpush1.bf16.msra.mxu0 %v442
        %456 = vmatprep.subr.bf16.mxu0 0
        %457 = vmatpush1.bf16.msra.mxu0 %v441
        %458 = vmatprep.subr.bf16.mxu0 0
        %459 = vmatpush1.bf16.msra.mxu0 %v440
        %460 = vmatprep.subr.bf16.mxu0 0
        %461 = vmatpush1.bf16.msra.mxu0 %v439
        %462 = vmatprep.subr.bf16.mxu0 0
        %463 = vmatpush1.bf16.msra.mxu0 %v438
        %464 = vmatprep.subr.bf16.mxu0 0
        %465 = vmatpush1.bf16.msra.mxu0 %v437
        %466 = vmatprep.subr.bf16.mxu0 0
        %467 = vmatpush1.bf16.msra.mxu0 %v436
        %468 = vmatprep.subr.bf16.mxu0 0
        %469 = vmatpush2.bf16.msra.mxu0 0
        %470 = vmatprep.subr.bf16.mxu0 0
        %471 = vmatpush2.bf16.msra.mxu0 0
        %472 = vmatprep.subr.bf16.mxu0 0
        %473 = vmatpush2.bf16.msra.mxu0 0
        %474 = vmatprep.subr.bf16.mxu0 0
        %475 = vmatpush2.bf16.msra.mxu0 0
        %476 = vmatprep.subr.bf16.mxu0 0
        %477 = vmatpush2.bf16.msra.mxu0 0
        %478 = vmatprep.subr.bf16.mxu0 0
        %479 = vmatpush2.bf16.msra.mxu0 0
        %480 = vmatprep.subr.bf16.mxu0 0
        %481 = vmatpush2.bf16.msra.mxu0 0
        %482 = vmatprep.subr.bf16.mxu0 0
        %483 = vmatpush2.bf16.msra.mxu0 0
        %484 = vmatprep.mubr.bf16.mxu0 0
        %485 = vmatmul.mubr.bf16.gmra.mxu0 %v396
        %v486 = vpop.f32.mrf.mxu0
        %v487 = vadd.f32 %v379, %v486
        %v488 = vpop.f32.mrf.mxu0
        %v489 = vpop.f32.mrf.mxu0
        %v490 = vadd.f32 %v379, %v489
        %v491 = vpop.f32.mrf.mxu0
        %492 = vmatprep.mubr.bf16.mxu0 0
        %493 = vmatmul.mubr.bf16.gmra.mxu0 %v397
        %v494 = vpop.f32.mrf.mxu0
        %v495 = vadd.f32 %v379, %v494
        %v496 = vpop.f32.mrf.mxu0
        %v497 = vpop.f32.mrf.mxu0
        %v498 = vadd.f32 %v379, %v497
        %v499 = vpop.f32.mrf.mxu0
        %500 = vmatprep.mubr.bf16.mxu0 0
        %501 = vmatmul.mubr.bf16.gmra.mxu0 %v398
        %v502 = vpop.f32.mrf.mxu0
        %v503 = vadd.f32 %v379, %v502
        %v504 = vpop.f32.mrf.mxu0
        %v505 = vpop.f32.mrf.mxu0
        %v506 = vadd.f32 %v379, %v505
        %v507 = vpop.f32.mrf.mxu0
        %508 = vmatprep.mubr.bf16.mxu0 0
        %509 = vmatmul.mubr.bf16.gmra.mxu0 %v399
        %v510 = vpop.f32.mrf.mxu0
        %v511 = vadd.f32 %v379, %v510
        %v512 = vpop.f32.mrf.mxu0
        %v513 = vpop.f32.mrf.mxu0
        %v514 = vadd.f32 %v379, %v513
        %v515 = vpop.f32.mrf.mxu0
        %516 = vdwg.mxu0
        %v517 = vpack.c.bf16 %v490, %v487
        %v518 = vpack.c.bf16 %v498, %v495
        %v519 = vpack.c.bf16 %v506, %v503
        %v520 = vpack.c.bf16 %v514, %v511
        %v525 = vunpack.c.l.b16 %v517
        %v526 = vunpack.c.h.b16 %v517
        %v527 = vunpack.c.l.b16 %v518
        %v528 = vunpack.c.h.b16 %v518
        %v529 = vunpack.c.l.b16 %v519
        %v530 = vunpack.c.h.b16 %v519
        %v531 = vunpack.c.l.b16 %v520
        %v532 = vunpack.c.h.b16 %v520
        %v533 = vpack.c.b16 %v525, %v525
        %v534 = vpack.c.b16 %v526, %v526
        %v535 = vpack.c.b16 %v527, %v527
        %v536 = vpack.c.b16 %v528, %v528
        %v537 = vpack.c.b16 %v529, %v529
        %v538 = vpack.c.b16 %v530, %v530
        %v539 = vpack.c.b16 %v531, %v531
        %v540 = vpack.c.b16 %v532, %v532
        %549 = vst [vmem:[%s314] sm:$0xf] %v533
        %550 = vst [vmem:[%s314 + $0x4] sm:$0xf] %v534
        %551 = vst [vmem:[%s314 + $0x8] sm:$0xf] %v535
        %552 = vst [vmem:[%s314 + $0xc] sm:$0xf] %v536
        %553 = vst [vmem:[%s314 + $0x10] sm:$0xf] %v537
        %554 = vst [vmem:[%s314 + $0x14] sm:$0xf] %v538
        %555 = vst [vmem:[%s314 + $0x18] sm:$0xf] %v539
        %556 = vst [vmem:[%s314 + $0x1c] sm:$0xf] %v540
        %v557 = vxor.u32 %v487, 2147483648
        %v558 = vxor.u32 %v490, 2147483648
        %v559 = vxor.u32 %v495, 2147483648
        %v560 = vxor.u32 %v498, 2147483648
        %v561 = vxor.u32 %v503, 2147483648
        %v562 = vxor.u32 %v506, 2147483648
        %v563 = vxor.u32 %v511, 2147483648
        %v564 = vxor.u32 %v514, 2147483648
        %v565 = vmul.f32 %v557, 1.442695
        %v566 = vpow.pop %v565
        %v567 = vmul.f32 %v558, 1.442695
        %v568 = vpow.pop %v567
        %v569 = vmul.f32 %v559, 1.442695
        %v570 = vpow.pop %v569
        %v571 = vmul.f32 %v560, 1.442695
        %v572 = vpow.pop %v571
        %v573 = vmul.f32 %v561, 1.442695
        %v574 = vpow.pop %v573
        %v575 = vmul.f32 %v562, 1.442695
        %v576 = vpow.pop %v575
        %v577 = vmul.f32 %v563, 1.442695
        %v578 = vpow.pop %v577
        %v579 = vmul.f32 %v564, 1.442695
        %v580 = vpow.pop %v579
        %v581 = vadd.f32 %v566, 1.0
        %v582 = vadd.f32 %v568, 1.0
        %v583 = vadd.f32 %v570, 1.0
        %v584 = vadd.f32 %v572, 1.0
        %v585 = vadd.f32 %v574, 1.0
        %v586 = vadd.f32 %v576, 1.0
        %v587 = vadd.f32 %v578, 1.0
        %v588 = vadd.f32 %v580, 1.0
        %v589 = vrcp.pop %v581
        %v590 = vmul.f32 1.0, %v589
        %v591 = vrcp.pop %v582
        %v592 = vmul.f32 1.0, %v591
        %v593 = vrcp.pop %v583
        %v594 = vmul.f32 1.0, %v593
        %v595 = vrcp.pop %v584
        %v596 = vmul.f32 1.0, %v595
        %v597 = vrcp.pop %v585
        %v598 = vmul.f32 1.0, %v597
        %v599 = vrcp.pop %v586
        %v600 = vmul.f32 1.0, %v599
        %v601 = vrcp.pop %v587
        %v602 = vmul.f32 1.0, %v601
        %v603 = vrcp.pop %v588
        %v604 = vmul.f32 1.0, %v603
        %v605 = vlaneseq
        %v606 = vshrl.u32 %v605, 7
        %v607 = vadd.s32 %v606, 8
        %v608 = vadd.s32 %v606, 16
        %v609 = vadd.s32 %v606, 24
        %v610 = vadd.s32 %v606, 32
        %v611 = vadd.s32 %v606, 40
        %v612 = vadd.s32 %v606, 48
        %v613 = vadd.s32 %v606, 56
        %v614 = vcvt.s32.f32 %v606
        %v615 = vcvt.s32.f32 %v607
        %v616 = vcvt.s32.f32 %v608
        %v617 = vcvt.s32.f32 %v609
        %v618 = vcvt.s32.f32 %v610
        %v619 = vcvt.s32.f32 %v611
        %v620 = vcvt.s32.f32 %v612
        %v621 = vcvt.s32.f32 %v613
        %v622 = vstv %s344
        %v623 = vadd.f32 %v622, %v614
        %v624 = vadd.f32 %v622, %v615
        %v625 = vadd.f32 %v622, %v616
        %v626 = vadd.f32 %v622, %v617
        %v627 = vadd.f32 %v622, %v618
        %v628 = vadd.f32 %v622, %v619
        %v629 = vadd.f32 %v622, %v620
        %v630 = vadd.f32 %v622, %v621
        %v631 = vadd.f32 %v623, 0.5
        %v632 = vadd.f32 %v624, 0.5
        %v633 = vadd.f32 %v625, 0.5
        %v634 = vadd.f32 %v626, 0.5
        %v635 = vadd.f32 %v627, 0.5
        %v636 = vadd.f32 %v628, 0.5
        %v637 = vadd.f32 %v629, 0.5
        %v638 = vadd.f32 %v630, 0.5
        %v639 = vstv %s330
        %v640 = vmul.f32 %v631, %v639
        %v641 = vmul.f32 %v632, %v639
        %v642 = vmul.f32 %v633, %v639
        %v643 = vmul.f32 %v634, %v639
        %v644 = vmul.f32 %v635, %v639
        %v645 = vmul.f32 %v636, %v639
        %v646 = vmul.f32 %v637, %v639
        %v647 = vmul.f32 %v638, %v639
        %v648 = vfloor.f32 %v640
        %v649 = vfloor.f32 %v641
        %v650 = vfloor.f32 %v642
        %v651 = vfloor.f32 %v643
        %v652 = vfloor.f32 %v644
        %v653 = vfloor.f32 %v645
        %v654 = vfloor.f32 %v646
        %v655 = vfloor.f32 %v647
        %v656 = vstv %s332
        %v657 = vmul.f32 %v648, %v656
        %v658 = vmul.f32 %v649, %v656
        %v659 = vmul.f32 %v650, %v656
        %v660 = vmul.f32 %v651, %v656
        %v661 = vmul.f32 %v652, %v656
        %v662 = vmul.f32 %v653, %v656
        %v663 = vmul.f32 %v654, %v656
        %v664 = vmul.f32 %v655, %v656
        %v665 = vsub.f32 %v623, %v657
        %v666 = vsub.f32 %v624, %v658
        %v667 = vsub.f32 %v625, %v659
        %v668 = vsub.f32 %v626, %v660
        %v669 = vsub.f32 %v627, %v661
        %v670 = vsub.f32 %v628, %v662
        %v671 = vsub.f32 %v629, %v663
        %v672 = vsub.f32 %v630, %v664
        %v673 = vadd.f32 %v648, 0.5
        %v674 = vadd.f32 %v649, 0.5
        %v675 = vadd.f32 %v650, 0.5
        %v676 = vadd.f32 %v651, 0.5
        %v677 = vadd.f32 %v652, 0.5
        %v678 = vadd.f32 %v653, 0.5
        %v679 = vadd.f32 %v654, 0.5
        %v680 = vadd.f32 %v655, 0.5
        %v681 = vstv %s334
        %v682 = vmul.f32 %v673, %v681
        %v683 = vmul.f32 %v674, %v681
        %v684 = vmul.f32 %v675, %v681
        %v685 = vmul.f32 %v676, %v681
        %v686 = vmul.f32 %v677, %v681
        %v687 = vmul.f32 %v678, %v681
        %v688 = vmul.f32 %v679, %v681
        %v689 = vmul.f32 %v680, %v681
        %v690 = vfloor.f32 %v682
        %v691 = vfloor.f32 %v683
        %v692 = vfloor.f32 %v684
        %v693 = vfloor.f32 %v685
        %v694 = vfloor.f32 %v686
        %v695 = vfloor.f32 %v687
        %v696 = vfloor.f32 %v688
        %v697 = vfloor.f32 %v689
        %v698 = vstv %s336
        %v699 = vmul.f32 %v690, %v698
        %v700 = vmul.f32 %v691, %v698
        %v701 = vmul.f32 %v692, %v698
        %v702 = vmul.f32 %v693, %v698
        %v703 = vmul.f32 %v694, %v698
        %v704 = vmul.f32 %v695, %v698
        %v705 = vmul.f32 %v696, %v698
        %v706 = vmul.f32 %v697, %v698
        %v707 = vsub.f32 %v648, %v699
        %v708 = vsub.f32 %v649, %v700
        %v709 = vsub.f32 %v650, %v701
        %v710 = vsub.f32 %v651, %v702
        %v711 = vsub.f32 %v652, %v703
        %v712 = vsub.f32 %v653, %v704
        %v713 = vsub.f32 %v654, %v705
        %v714 = vsub.f32 %v655, %v706
        %v715 = vstv %s338
        %v716 = vmul.f32 %v665, %v715
        %v717 = vmul.f32 %v666, %v715
        %v718 = vmul.f32 %v667, %v715
        %v719 = vmul.f32 %v668, %v715
        %v720 = vmul.f32 %v669, %v715
        %v721 = vmul.f32 %v670, %v715
        %v722 = vmul.f32 %v671, %v715
        %v723 = vmul.f32 %v672, %v715
        %v724 = vstv %s342
        %v725 = vadd.f32 %v716, %v724
        %v726 = vadd.f32 %v717, %v724
        %v727 = vadd.f32 %v718, %v724
        %v728 = vadd.f32 %v719, %v724
        %v729 = vadd.f32 %v720, %v724
        %v730 = vadd.f32 %v721, %v724
        %v731 = vadd.f32 %v722, %v724
        %v732 = vadd.f32 %v723, %v724
        %v733 = vmul.f32 %v707, %v715
        %v734 = vmul.f32 %v708, %v715
        %v735 = vmul.f32 %v709, %v715
        %v736 = vmul.f32 %v710, %v715
        %v737 = vmul.f32 %v711, %v715
        %v738 = vmul.f32 %v712, %v715
        %v739 = vmul.f32 %v713, %v715
        %v740 = vmul.f32 %v714, %v715
        %v741 = vadd.f32 %v733, %v724
        %v742 = vadd.f32 %v734, %v724
        %v743 = vadd.f32 %v735, %v724
        %v744 = vadd.f32 %v736, %v724
        %v745 = vadd.f32 %v737, %v724
        %v746 = vadd.f32 %v738, %v724
        %v747 = vadd.f32 %v739, %v724
        %v748 = vadd.f32 %v740, %v724
        %v749 = vsel %vm349, 1, 0
        %v750 = vlaneseq
        %v751 = vshrl.u32 %v750, 7
        %v752 = vsub.s32 0, %v751
        %v753 = vrot.slane %v749, %v752
        %vm754 = vcmp.eq.s32.totalorder %v753, 1
        %v755 = vsel %vm754, %v741, 0.0
        %v756 = vsel %vm754, %v742, 0.0
        %v757 = vsel %vm754, %v743, 0.0
        %v758 = vsel %vm754, %v744, 0.0
        %v759 = vsel %vm754, %v745, 0.0
        %v760 = vsel %vm754, %v746, 0.0
        %v761 = vsel %vm754, %v747, 0.0
        %v762 = vsel %vm754, %v748, 0.0
        %v763 = vsel %vm348, 1, 0
        %v764 = vlaneseq
        %v765 = vshrl.u32 %v764, 7
        %v766 = vsub.s32 0, %v765
        %v767 = vrot.slane %v763, %v766
        %vm768 = vcmp.eq.s32.totalorder %v767, 1
        %v769 = vsel %vm768, %v725, %v755
        %v770 = vsel %vm768, %v726, %v756
        %v771 = vsel %vm768, %v727, %v757
        %v772 = vsel %vm768, %v728, %v758
        %v773 = vsel %vm768, %v729, %v759
        %v774 = vsel %vm768, %v730, %v760
        %v775 = vsel %vm768, %v731, %v761
        %v776 = vsel %vm768, %v732, %v762
        %v777 = vstv %s340
        %v778 = vmul.f32 %v590, %v777
        %v779 = vmul.f32 %v592, %v777
        %v780 = vmul.f32 %v594, %v777
        %v781 = vmul.f32 %v596, %v777
        %v782 = vmul.f32 %v598, %v777
        %v783 = vmul.f32 %v600, %v777
        %v784 = vmul.f32 %v602, %v777
        %v785 = vmul.f32 %v604, %v777
        %v786 = vadd.f32 %v778, %v769
        %v787 = vadd.f32 %v779, %v770
        %v788 = vadd.f32 %v780, %v771
        %v789 = vadd.f32 %v781, %v772
        %v790 = vadd.f32 %v782, %v773
        %v791 = vadd.f32 %v783, %v774
        %v792 = vadd.f32 %v784, %v775
        %v793 = vadd.f32 %v785, %v776
        %v794 = vmul.f32 %v590, %v590
        %v795 = vmul.f32 %v592, %v592
        %v796 = vmul.f32 %v594, %v594
        %v797 = vmul.f32 %v596, %v596
        %v798 = vmul.f32 %v598, %v598
        %v799 = vmul.f32 %v600, %v600
        %v800 = vmul.f32 %v602, %v602
        %v801 = vmul.f32 %v604, %v604
        %v802 = vlaneseq
        %v803 = vshrl.u32 %v802, 7
        %v804 = vsub.s32 0, %v803
        %v805 = vrot.slane %v346, %v804
        %v806 = vmul.f32 %v794, %v805
        %v807 = vmul.f32 %v795, %v805
        %v808 = vmul.f32 %v796, %v805
        %v809 = vmul.f32 %v797, %v805
        %v810 = vmul.f32 %v798, %v805
        %v811 = vmul.f32 %v799, %v805
        %v812 = vmul.f32 %v800, %v805
        %v813 = vmul.f32 %v801, %v805
        %v814 = vsel %vm351, 1, 0
        %v815 = vlaneseq
        %v816 = vshrl.u32 %v815, 7
        %v817 = vsub.s32 0, %v816
        %v818 = vrot.slane %v814, %v817
        %vm819 = vcmp.eq.s32.totalorder %v818, 1
        %v820 = vsel %vm819, %v806, %v590
        %v821 = vsel %vm819, %v807, %v592
        %v822 = vsel %vm819, %v808, %v594
        %v823 = vsel %vm819, %v809, %v596
        %v824 = vsel %vm819, %v810, %v598
        %v825 = vsel %vm819, %v811, %v600
        %v826 = vsel %vm819, %v812, %v602
        %v827 = vsel %vm819, %v813, %v604
        %v828 = vsel %vm350, 1, 0
        %v829 = vlaneseq
        %v830 = vshrl.u32 %v829, 7
        %v831 = vsub.s32 0, %v830
        %v832 = vrot.slane %v828, %v831
        %vm833 = vcmp.eq.s32.totalorder %v832, 1
        %v834 = vsel %vm833, %v786, %v820
        %v835 = vsel %vm833, %v787, %v821
        %v836 = vsel %vm833, %v788, %v822
        %v837 = vsel %vm833, %v789, %v823
        %v838 = vsel %vm833, %v790, %v824
        %v839 = vsel %vm833, %v791, %v825
        %v840 = vsel %vm833, %v792, %v826
        %v841 = vsel %vm833, %v793, %v827
        %842 = vst [vmem:[%s321] sm:$0xff] %v834
        %843 = vst [vmem:[%s321 + $0x8] sm:$0xff] %v835
        %844 = vst [vmem:[%s321 + $0x10] sm:$0xff] %v836
        %845 = vst [vmem:[%s321 + $0x18] sm:$0xff] %v837
        %846 = vst [vmem:[%s321 + $0x20] sm:$0xff] %v838
        %847 = vst [vmem:[%s321 + $0x28] sm:$0xff] %v839
        %848 = vst [vmem:[%s321 + $0x30] sm:$0xff] %v840
        %849 = vst [vmem:[%s321 + $0x38] sm:$0xff] %v841
        %s850 = sand.u32 %s133, 1
        %s851 = scalar_lea.sflag [#allocation8], %s850
        %s852 = sand.u32 %s133, 1
        %s853 = smul.addr %s852, 32
        %s854 = scalar_lea.vmem [#allocation12], %s853
        %s855 = sand.u32 %s159, 1
        %s856 = scalar_lea.sflag [#allocation14], %s855
        %s857 = sand.u32 %s159, 1
        %s858 = smul.addr %s857, 64
        %s859 = scalar_lea.vmem [#allocation13], %s858
        // Predicated region
        $region45: #{tpu_custom_call.1} parent=31 // pred_check
          %p860 = pneg %p143
        $region46: #{tpu_custom_call.1} parent=31 // pred_check_branch
          %862 = sbr.rel (%p860) target = $region48
        $region47: #{tpu_custom_call.1} parent=31 // pred_region
          %s863 = smul.u32 8, %s43
          %s865 = ssub.s32 512, 512
          %866 = vsyncadd %s851, %s865
          %s867 = smul.addr %s863, 64
          %s868 = scalar_lea.hbm %s6, %s867
          %s869 = sshll.u32 %s854, 4
          %s870 = int_to_ptr.vmem [resolvable:$true] %s869
          %875 = dma.vmem_to_hbm [thread:$0]  %s870, 512, %s868, %s851, 64, 64, 4
        $region48: #{tpu_custom_call.1} parent=31 // pred_fallthru
          _
        // Predicated region
        $region49: #{tpu_custom_call.1} parent=31 // pred_check
          %p876 = pneg %p169
        $region50: #{tpu_custom_call.1} parent=31 // pred_check_branch
          %878 = sbr.rel (%p876) target = $region52
        $region51: #{tpu_custom_call.1} parent=31 // pred_region
          %s879 = smul.u32 8, %s43
          %s881 = ssub.s32 1024, 1024
          %882 = vsyncadd %s856, %s881
          %s883 = smul.addr %s879, 128
          %s884 = scalar_lea.hbm %s7, %s883
          %s885 = sshll.u32 %s859, 4
          %s886 = int_to_ptr.vmem [resolvable:$true] %s885
          %891 = dma.vmem_to_hbm [thread:$0]  %s886, 1024, %s884, %s856, 128, 128, 8
        $region52: #{tpu_custom_call.1} parent=31 // pred_fallthru
          _
      $region32: #{tpu_custom_call.1} parent=5 // pred_fallthru
        _
      %p892 = scmp.le.s32.totalorder 2, %s38
      // Predicated region
      $region53: #{tpu_custom_call.1} parent=5 // pred_check
        %p893 = pneg %p892
      $region54: #{tpu_custom_call.1} parent=5 // pred_check_branch
        %895 = sbr.rel (%p893) target = $region56
      $region55: #{tpu_custom_call.1} parent=5 // pred_region
        %s896 = ssub.s32 %s38, 2
        // Predicated region
        $region57: #{tpu_custom_call.1} parent=55 // pred_check
          %p897 = pneg %p149
        $region58: #{tpu_custom_call.1} parent=55 // pred_check_branch
          %899 = sbr.rel (%p897) target = $region60
        $region59: #{tpu_custom_call.1} parent=55 // pred_region
          %s900 = sand.u32 %s134, 1
          %s901 = scalar_lea.sflag [#allocation8], %s900
          %s902 = sand.u32 %s134, 1
          %s903 = smul.addr %s902, 32
          %s904 = scalar_lea.vmem [#allocation12], %s903
          %905 = dma.done %s901, 512
        $region60: #{tpu_custom_call.1} parent=55 // pred_fallthru
          _
        // Predicated region
        $region61: #{tpu_custom_call.1} parent=55 // pred_check
          %p906 = pneg %p175
        $region62: #{tpu_custom_call.1} parent=55 // pred_check_branch
          %908 = sbr.rel (%p906) target = $region64
        $region63: #{tpu_custom_call.1} parent=55 // pred_region
          %s909 = sand.u32 %s160, 1
          %s910 = scalar_lea.sflag [#allocation14], %s909
          %s911 = sand.u32 %s160, 1
          %s912 = smul.addr %s911, 64
          %s913 = scalar_lea.vmem [#allocation13], %s912
          %914 = dma.done %s910, 1024
        $region64: #{tpu_custom_call.1} parent=55 // pred_fallthru
          _
      $region56: #{tpu_custom_call.1} parent=5 // pred_fallthru
        _
    $region6: #{tpu_custom_call.1} parent=1 // loop_footer
      %s42 = sadd.s32 1, %s38
    $region7: #{tpu_custom_call.1} parent=1 // loop_footer_branch
      %37 = sbr.rel target = $region3
    $region8: #{tpu_custom_call.1} parent=1 // loop_exit
      _
    %915 = vsyncpa [#allocation7], 1
    %s916 = scalar_lea.sflag [#allocation7], 1
    %917 = vsyncpa %s916, 1
    %918 = vsyncpa [#allocation10], 1
    %s919 = scalar_lea.sflag [#allocation10], 1
    %920 = vsyncpa %s919, 1
    %921 = vsyncpa [#allocation8], 1
    %s922 = scalar_lea.sflag [#allocation8], 1
    %923 = vsyncpa %s922, 1
    %924 = vsyncpa [#allocation14], 1
    %s925 = scalar_lea.sflag [#allocation14], 1
    %926 = vsyncpa %s925, 1

</llo_original>
